<compile_context>
chip_gen: v6e
topology: v6e:2x2x1
jax: 0.10.0
libtpu: 0.0.40
codegen_flags: <defaults>
</compile_context>

<pallas_src>
import functools

import jax
import jax.numpy as jnp
from jax import lax
from jax.experimental import pallas as pl
from jax.experimental.pallas import tpu as pltpu


def _round_up(a, b):
    return (a + b - 1) // b * b


def _vmem_capacity_bytes():
    # Generation-aware VMEM capacity (128 MiB/TC on v5e/v6e, 64 MiB/TC on v7x).
    # Fall back to the most conservative value if the query is unavailable
    # (e.g. interpret mode off-TPU).
    try:
        cap = int(pltpu.get_tpu_info().vmem_capacity_bytes)
        if cap > 0:
            return cap
    except Exception:
        pass
    return 64 * 1024 * 1024


def _linear_kernel(x_ref, wt_ref, b_ref, o_ref, *, fuse_softmax):
    # x_ref:  (tm, K) input row tile
    # wt_ref: (K, K)  pre-transposed weight (in_features, out_features), resident
    # b_ref:  (1, K)  bias row
    # o_ref:  (tm, K) output row tile (logits or softmax probabilities)
    logits = lax.dot_general(
        x_ref[...],
        wt_ref[...],
        dimension_numbers=(((1,), (0,)), ((), ())),  # plain x @ W^T layout
        preferred_element_type=jnp.float32,
    ) + b_ref[...]

    if fuse_softmax:
        # Row softmax fused into the epilogue -> one HBM pass for evaluate().
        # Rows beyond N in the last partial tile may hold garbage; their exp()
        # can overflow but those rows are dropped on write-back (correct result).
        m = jnp.max(logits, axis=-1, keepdims=True)
        e = jnp.exp(logits - m)
        s = jnp.sum(e, axis=-1, keepdims=True)
        o_ref[...] = (e / s).astype(o_ref.dtype)  # exact divide (parity w/ torch)
    else:
        o_ref[...] = logits.astype(o_ref.dtype)


@functools.partial(jax.jit, static_argnames=("fuse_softmax",))
def _matrix_scaling_call(x, weight, bias, *, fuse_softmax=False):
    """out = x @ weight.T + bias, optionally followed by a fused row softmax.

    x:      (N, K) float32
    weight: (K, K) float32, PyTorch nn.Linear convention (out_features, in_features)
    bias:   (K,)   float32
    """
    N, K = x.shape

    # One-time, loop-invariant transpose outside the kernel so the per-step
    # dot_general needs no in-kernel XLU transpose of the weight.
    # TODO(synk): for repeated inference, cache weight.T / bias[None, :] at
    # module init to hoist these small ops out of the per-call hot path.
    wt = weight.T
    b2 = bias.reshape(1, K)

    # Row-tile sizing (kernel is HBM-bandwidth bound): target ~2 MiB f32 x-tile,
    # clamped to the data, to >=2 grid steps when N allows (v7x megacore), and
    # to the VMEM budget (double-buffered x/out tiles + single-buffered weight).
    target_tile_bytes = 2 * 1024 * 1024
    tm = max(256, min(8192, _round_up(max(1, target_tile_bytes // (4 * K)), 8)))
    tm = min(tm, _round_up(N, 8))
    tm = min(tm, max(8, _round_up(pl.cdiv(N, 2), 8)))

    vmem_cap = _vmem_capacity_bytes()
    budget = vmem_cap - 16 * 1024 * 1024  # headroom for compiler-internal scratch
    # bytes ~= 4 * (2*2*tm*K [x/out double-buffered] + K*K [weight, 1 buf] + K)
    max_tm_by_vmem = (budget // 4 - K * K - K) // (4 * K)
    max_tm_by_vmem = max(8, (max_tm_by_vmem // 8) * 8)
    tm = max(8, min(tm, max_tm_by_vmem))
    # TODO(synk): for K so large that the (K, K) weight itself exceeds VMEM, a
    # K-tiled contraction with a VMEM accumulator would be required.

    grid = (pl.cdiv(N, tm),)
    kernel = functools.partial(_linear_kernel, fuse_softmax=fuse_softmax)

    cost = pl.CostEstimate(
        flops=2 * N * K * K,
        transcendentals=(N * K) if fuse_softmax else 0,
        bytes_accessed=4 * (2 * N * K + K * K + K),
    )

    vmem_used = 4 * (4 * tm * K + K * K + K)
    vmem_limit = max(1 << 20, min(vmem_cap - 8 * 1024 * 1024, vmem_used + (4 << 20)))

    # Grid-invariant operands: single buffer (index_map is constant).
    weight_spec = pl.BlockSpec((K, K), lambda i: (0, 0), pipeline_mode=pl.Buffered(1))
    bias_spec = pl.BlockSpec((1, K), lambda i: (0, 0), pipeline_mode=pl.Buffered(1))

    return pl.pallas_call(
        kernel,
        out_shape=jax.ShapeDtypeStruct((N, K), x.dtype),
        grid_spec=pltpu.PrefetchScalarGridSpec(
            num_scalar_prefetch=0,
            grid=grid,
            in_specs=[
                pl.BlockSpec((tm, K), lambda i: (i, 0)),  # x row tile
                weight_spec,                              # resident weight
                bias_spec,                                # bias row
            ],
            out_specs=pl.BlockSpec((tm, K), lambda i: (i, 0)),
        ),
        compiler_params=pltpu.CompilerParams(
            dimension_semantics=("parallel",),
            vmem_limit_bytes=int(vmem_limit),
        ),
        cost_estimate=cost,
    )(x, wt, b2)


def matrix_scaling_forward(x, weight, bias):
    """MatrixScaling.forward == nn.Linear(K, K): x @ weight.T + bias."""
    return _matrix_scaling_call(x, weight, bias, fuse_softmax=False)


def matrix_scaling_evaluate(x, weight, bias):
    """MatrixScaling.evaluate: softmax(forward(x), dim=1), fused in-kernel."""
    return _matrix_scaling_call(x, weight, bias, fuse_softmax=True)


if __name__ == "__main__":
    # Small shapes consistent with the module: N samples of K-class logits.
    N, K = 8, 32

    key = jax.random.PRNGKey(0)
    k_x, k_w, k_b = jax.random.split(key, 3)

    # Deterministic parameter init mirroring nn.Linear's default:
    # U(-1/sqrt(K), 1/sqrt(K)) for both weight and bias.
    bound = 1.0 / float(K) ** 0.5
    weight = jax.random.uniform(k_w, (K, K), jnp.float32, -bound, bound)
    bias = jax.random.uniform(k_b, (K,), jnp.float32, -bound, bound)

    x = jax.random.normal(k_x, (N, K), jnp.float32)

    # forward()
    out = jax.block_until_ready(matrix_scaling_forward(x, weight, bias))
    ref = x @ weight.T + bias
    assert out.shape == (N, K)
    assert jnp.allclose(out, ref, atol=1e-5, rtol=1e-5), "forward mismatch vs reference"

    # evaluate(): fused softmax epilogue (exact divide -> tight tolerance)
    probs = jax.block_until_ready(matrix_scaling_evaluate(x, weight, bias))
    ref_probs = jax.nn.softmax(ref, axis=1)
    assert probs.shape == (N, K)
    assert jnp.allclose(probs, ref_probs, atol=1e-5, rtol=1e-5), "softmax mismatch"
    assert jnp.allclose(jnp.sum(probs, axis=1), 1.0, atol=1e-5), "rows must sum to 1"

    print("KERNEL_OK")
</pallas_src>

<mosaic_0001>
module attributes {stable_mosaic.version = 11 : i64} {
  func.func @_linear_kernel(%arg0: i32, %arg1: memref<8x32xf32, #tpu.memory_space<vmem>>, %arg2: memref<32x32xf32, #tpu.memory_space<vmem>>, %arg3: memref<1x32xf32, #tpu.memory_space<vmem>>, %arg4: memref<8x32xf32, #tpu.memory_space<vmem>>) attributes {dimension_semantics = [#tpu.dimension_semantics<parallel>], iteration_bounds = array<i64: 1>, scalar_prefetch = 0 : i64, scratch_operands = 0 : i64, tpu.core_type = #tpu.core_type<tc>, window_params = [{transform_indices = @transform_0, window_bounds = array<i64: 8, 32>}, {pipeline_mode = #tpu.pipeline_mode<synchronous>, transform_indices = @transform_1, window_bounds = array<i64: 32, 32>}, {pipeline_mode = #tpu.pipeline_mode<synchronous>, transform_indices = @transform_2, window_bounds = array<i64: 1, 32>}, {transform_indices = @transform_3, window_bounds = array<i64: 8, 32>}]} {
    %c0 = arith.constant 0 : index
    %c0_0 = arith.constant 0 : index
    %0 = vector.load %arg1[%c0, %c0_0] : memref<8x32xf32, #tpu.memory_space<vmem>>, vector<8x32xf32>
    %c0_1 = arith.constant 0 : index
    %c0_2 = arith.constant 0 : index
    %1 = vector.load %arg2[%c0_1, %c0_2] : memref<32x32xf32, #tpu.memory_space<vmem>>, vector<32x32xf32>
    %cst = arith.constant dense<0.000000e+00> : vector<8x32xf32>
    %2 = tpu.matmul %0, %1, %cst {dimension_numbers = #tpu.dot_dimension_numbers<[1], [0], [0], [1], [0, 0, 1, 1], [], []>} : vector<8x32xf32>, vector<32x32xf32>, vector<8x32xf32> -> vector<8x32xf32>
    %c0_3 = arith.constant 0 : index
    %c0_4 = arith.constant 0 : index
    %3 = vector.load %arg3[%c0_3, %c0_4] : memref<1x32xf32, #tpu.memory_space<vmem>>, vector<1x32xf32>
    %4 = vector.broadcast %3 : vector<1x32xf32> to vector<8x32xf32>
    %5 = arith.addf %2, %4 : vector<8x32xf32>
    %c0_5 = arith.constant 0 : index
    %c0_6 = arith.constant 0 : index
    %6 = vector.load %arg4[%c0_5, %c0_6] : memref<8x32xf32, #tpu.memory_space<vmem>>, vector<8x32xf32>
    tpu.vector_store %arg4[%c0_5, %c0_6], %5 {strides = array<i32>} : memref<8x32xf32, #tpu.memory_space<vmem>>, vector<8x32xf32>,
    return
  }
  func.func @transform_0(%arg0: i32) -> (i32, i32) {
    %c0_i32 = arith.constant 0 : i32
    %c0_i32_0 = arith.constant 0 : i32
    return %arg0, %c0_i32 : i32, i32
  }
  func.func @transform_1(%arg0: i32) -> (i32, i32) {
    %c0_i32 = arith.constant 0 : i32
    %c0_i32_0 = arith.constant 0 : i32
    %c0_i32_1 = arith.constant 0 : i32
    return %c0_i32, %c0_i32_0 : i32, i32
  }
  func.func @transform_2(%arg0: i32) -> (i32, i32) {
    %c0_i32 = arith.constant 0 : i32
    %c0_i32_0 = arith.constant 0 : i32
    %c0_i32_1 = arith.constant 0 : i32
    return %c0_i32, %c0_i32_0 : i32, i32
  }
  func.func @transform_3(%arg0: i32) -> (i32, i32) {
    %c0_i32 = arith.constant 0 : i32
    %c0_i32_0 = arith.constant 0 : i32
    return %arg0, %c0_i32 : i32, i32
  }
}

</mosaic_0001>

<llo_original>
// kernel: _matrix_scaling_call.1
$region0: #{_matrix_scaling_call.1}
  #allocation0 [shape = 'u32[]', space=smem, size = 0x4, offset = 0x4, fixed_abs, tag = 'smem constant byte address 0x4 - core index']
  #allocation1 [shape = 'u32[144,128]{1,0:T(1,128)}', space=vmem, size = 0x12000, scoped, tag = 'internal scratch']
  %s0 = inlined_call_operand.vmem [shape: f32[8,32], index: 0, kind: input, shape index: {}]
  %s1 = inlined_call_operand.vmem [shape: f32[32,32], index: 1, kind: input, shape index: {}]
  %s2 = inlined_call_operand.vmem [shape: f32[1,32], index: 2, kind: input, shape index: {}]
  %s3 = inlined_call_operand.hbm [shape: f32[8,32], index: 3, kind: output, shape index: {}]
  %s4 = sld [smem:[#allocation0]]
  $region22: #{_matrix_scaling_call.1} parent=0
    _
  %s6 = ssub.s32 1, %s4
  %s7 = scalar_select 0, %s6, %s4
  $region1: #{_matrix_scaling_call.1} parent=0
    #allocation2 [shape = 'u8[4096]{0}', space=vmem, size = 0x1000, scoped, tag = 'output window, operand 0, single buffered']
    #allocation3 [shape = 's32[1]{0}', space=sflag, size = 0x4, scoped, tag = 'scoped memory for _matrix_scaling_call.1']
    %8 = vsyncpa [#allocation3], 0
    // Predicated region
    $region2: #{_matrix_scaling_call.1} parent=1 // pred_check
      _
    $region3: #{_matrix_scaling_call.1} parent=1 // pred_check_branch
      %10 = sbr.rel (0) target = $region5
    $region4: #{_matrix_scaling_call.1} parent=1 // pred_region
      _
    $region5: #{_matrix_scaling_call.1} parent=1 // pred_fallthru
      _
    // Predicated region
    $region6: #{_matrix_scaling_call.1} parent=1 // pred_check
      _
    $region7: #{_matrix_scaling_call.1} parent=1 // pred_check_branch
      %12 = sbr.rel (0) target = $region9
    $region8: #{_matrix_scaling_call.1} parent=1 // pred_region
      _
    $region9: #{_matrix_scaling_call.1} parent=1 // pred_fallthru
      _
    // Predicated region
    $region10: #{_matrix_scaling_call.1} parent=1 // pred_check
      _
    $region11: #{_matrix_scaling_call.1} parent=1 // pred_check_branch
      %14 = sbr.rel (0) target = $region13
    $region12: #{_matrix_scaling_call.1} parent=1 // pred_region
      _
    $region13: #{_matrix_scaling_call.1} parent=1 // pred_fallthru
      _
    %v15 = vld [vmem:[%s0] sm:$0xff]
    %v16 = vld [vmem:[%s1] sm:$0xff]
    %v17 = vld [vmem:[%s1 + $0x8] sm:$0xff]
    %v18 = vld [vmem:[%s1 + $0x10] sm:$0xff]
    %v19 = vld [vmem:[%s1 + $0x18] sm:$0xff]
    %v20 = vld [vmem:[%s2] sm:$0x1]
    %v22 = vlaneseq
    %v23 = vshrl.u32 %v22, 7
    %v24 = vsub.s32 0, %v23
    %v25 = vrot.slane %v20, %v24
    %vm27 = vcmask 261120
    %v29 = vsel %vm27, %v15, 0
    %31 = vmatprep.subr.mxu0 0.0
    %32 = vmatpush1.msra.mxu0 0.0
    %33 = vmatprep.subr.mxu0 0.0
    %34 = vmatpush1.msra.mxu0 0.0
    %35 = vmatprep.subr.mxu0 0.0
    %36 = vmatpush1.msra.mxu0 0.0
    %37 = vmatprep.subr.mxu0 0.0
    %38 = vmatpush1.msra.mxu0 0.0
    %39 = vmatprep.subr.mxu0 0.0
    %40 = vmatpush1.msra.mxu0 0.0
    %41 = vmatprep.subr.mxu0 0.0
    %42 = vmatpush1.msra.mxu0 0.0
    %43 = vmatprep.subr.mxu0 0.0
    %44 = vmatpush1.msra.mxu0 0.0
    %45 = vmatprep.subr.mxu0 0.0
    %46 = vmatpush1.msra.mxu0 0.0
    %47 = vmatprep.subr.mxu0 0.0
    %48 = vmatpush1.msra.mxu0 0.0
    %49 = vmatprep.subr.mxu0 0.0
    %50 = vmatpush1.msra.mxu0 0.0
    %51 = vmatprep.subr.mxu0 0.0
    %52 = vmatpush1.msra.mxu0 0.0
    %53 = vmatprep.subr.mxu0 0.0
    %54 = vmatpush1.msra.mxu0 0.0
    %55 = vmatprep.subr.mxu0 0.0
    %56 = vmatpush1.msra.mxu0 %v19
    %57 = vmatprep.subr.mxu0 0.0
    %58 = vmatpush1.msra.mxu0 %v18
    %59 = vmatprep.subr.mxu0 0.0
    %60 = vmatpush1.msra.mxu0 %v17
    %61 = vmatprep.subr.mxu0 0.0
    %62 = vmatpush1.msra.mxu0 %v16
    %63 = vmatprep.subr.mxu0 0.0
    %64 = vmatpush2.msra.mxu0 0.0
    %65 = vmatprep.subr.mxu0 0.0
    %66 = vmatpush2.msra.mxu0 0.0
    %67 = vmatprep.subr.mxu0 0.0
    %68 = vmatpush2.msra.mxu0 0.0
    %69 = vmatprep.subr.mxu0 0.0
    %70 = vmatpush2.msra.mxu0 0.0
    %71 = vmatprep.subr.mxu0 0.0
    %72 = vmatpush2.msra.mxu0 0.0
    %73 = vmatprep.subr.mxu0 0.0
    %74 = vmatpush2.msra.mxu0 0.0
    %75 = vmatprep.subr.mxu0 0.0
    %76 = vmatpush2.msra.mxu0 0.0
    %77 = vmatprep.subr.mxu0 0.0
    %78 = vmatpush2.msra.mxu0 0.0
    %79 = vmatprep.subr.mxu0 0.0
    %80 = vmatpush2.msra.mxu0 0.0
    %81 = vmatprep.subr.mxu0 0.0
    %82 = vmatpush2.msra.mxu0 0.0
    %83 = vmatprep.subr.mxu0 0.0
    %84 = vmatpush2.msra.mxu0 0.0
    %85 = vmatprep.subr.mxu0 0.0
    %86 = vmatpush2.msra.mxu0 0.0
    %87 = vmatprep.subr.mxu0 0.0
    %88 = vmatpush2.msra.mxu0 0.0
    %89 = vmatprep.subr.mxu0 0.0
    %90 = vmatpush2.msra.mxu0 0.0
    %91 = vmatprep.subr.mxu0 0.0
    %92 = vmatpush2.msra.mxu0 0.0
    %93 = vmatprep.subr.mxu0 0.0
    %94 = vmatpush2.msra.mxu0 0.0
    %95 = vmatprep.mubr.f32.mxu0 0.0
    %96 = vmatmul.mubr.f32.gmra.mxu0 %v29
    %v97 = vpop.f32.mrf.mxu0
    %v98 = vadd.f32 %v25, %v97
    %v99 = vpop.f32.mrf.mxu0
    %100 = vdwg.mxu0
    %101 = vst.msk [vmem:[#allocation2] sm:$0xff] %vm27, %v98
    // Predicated region
    $region14: #{_matrix_scaling_call.1} parent=1 // pred_check
      _
    $region15: #{_matrix_scaling_call.1} parent=1 // pred_check_branch
      %103 = sbr.rel (0) target = $region17
    $region16: #{_matrix_scaling_call.1} parent=1 // pred_region
      %s105 = ssub.s32 128, 128
      %106 = vsyncadd [#allocation3], %s105
      %s108 = sshll.u32 [#allocation2], 4
      %s109 = int_to_ptr.vmem [resolvable:$true] %s108
      %111 = dma.vmem_to_hbm [thread:$0]  %s109, 128, %s3, [#allocation3]
    $region17: #{_matrix_scaling_call.1} parent=1 // pred_fallthru
      _
    // Predicated region
    $region18: #{_matrix_scaling_call.1} parent=1 // pred_check
      _
    $region19: #{_matrix_scaling_call.1} parent=1 // pred_check_branch
      %113 = sbr.rel (0) target = $region21
    $region20: #{_matrix_scaling_call.1} parent=1 // pred_region
      %114 = dma.done [#allocation3], 128
    $region21: #{_matrix_scaling_call.1} parent=1 // pred_fallthru
      _
    %115 = vsyncpa [#allocation3], 1

</llo_original>
